<compile_context>
chip_gen: v5e
topology: v5e:2x2
jax: 0.10.0
libtpu: 0.0.40
codegen_flags: <defaults>
</compile_context>

<pallas_src>
import jax
import jax.numpy as jnp
from jax.experimental import pallas as pl
from jax.experimental.pallas import tpu as pltpu


def mlp_kernel(x_ref, w1_ref, b1_ref, w2_ref, b2_ref, w3_ref, b3_ref, out_ref):
    x = x_ref[...]                                                         # (TB, 82)
    # Layer 1: Linear(82 -> 20) + ReLU   (f32 accumulation on the MXU)
    h1 = jnp.dot(x, w1_ref[...], preferred_element_type=jnp.float32) + b1_ref[...]
    h1 = jnp.maximum(h1, 0.0)
    # Layer 2: Linear(20 -> 20) + ReLU
    h2 = jnp.dot(h1, w2_ref[...], preferred_element_type=jnp.float32) + b2_ref[...]
    h2 = jnp.maximum(h2, 0.0)
    # Output layer: Linear(20 -> 3), no activation
    out_ref[...] = jnp.dot(h2, w3_ref[...], preferred_element_type=jnp.float32) + b3_ref[...]


def ann_model_forward(x, params, *, batch_tile=8192):
    """Fused MLP forward pass as a single batch-tiled Pallas kernel.

    x: (batch, 82) float32 (bf16 also accepted; accumulation stays f32)
    params: dict with w1 (82,20), b1 (1,20), w2 (20,20), b2 (1,20),
            w3 (20,3), b3 (1,3).
    """
    w1, b1, w2, b2, w3, b3 = (params["w1"], params["b1"], params["w2"],
                              params["b2"], params["w3"], params["b3"])
    batch, in_features = x.shape
    out_features = w3.shape[1]

    # Batch tile selection:
    #   * multiple of 8 (sublane rule for the partial-block path), unless it
    #     equals the whole batch (full-dim block is always legal),
    #   * capped at batch_tile (VMEM budget; ~24-28 MiB at 8192 rows incl.
    #     lane padding + double buffering -> fits v7x's 64 MiB/TC),
    #   * >= 2 grid steps whenever possible so both v7x TensorCores get work.
    half = -(-batch // 2)                       # cdiv(batch, 2)
    tb = min(batch_tile, ((half + 7) // 8) * 8)
    if tb >= batch:
        tb = batch                              # single full block
    grid = (pl.cdiv(batch, tb),)

    # Weights/biases: full-array blocks, same block index every step -> VMEM-resident.
    def resident(a):
        return pl.BlockSpec(a.shape, lambda i: (0,) * a.ndim)

    return pl.pallas_call(
        mlp_kernel,
        out_shape=jax.ShapeDtypeStruct((batch, out_features), jnp.float32),
        grid_spec=pltpu.PrefetchScalarGridSpec(
            num_scalar_prefetch=0,
            grid=grid,
            in_specs=[
                pl.BlockSpec((tb, in_features), lambda i: (i, 0)),  # x: batch-tiled stream
                resident(w1), resident(b1),
                resident(w2), resident(b2),
                resident(w3), resident(b3),
            ],
            out_specs=pl.BlockSpec((tb, out_features), lambda i: (i, 0)),
        ),
        compiler_params=pltpu.CompilerParams(
            dimension_semantics=("parallel",),      # batch axis: megacore-shardable
            vmem_limit_bytes=48 * 1024 * 1024,      # headroom for tb=8192 incl. lane padding
        ),
    )(x, w1, b1, w2, b2, w3, b3)


def init_params(key, input_features=82, hidden1=20, hidden2=20, out_features=3):
    """Deterministic init mimicking PyTorch nn.Linear default (uniform +-1/sqrt(fan_in))."""
    ks = jax.random.split(key, 6)

    def linear(kw, kb, fan_in, fan_out):
        bound = 1.0 / jnp.sqrt(jnp.float32(fan_in))
        w = jax.random.uniform(kw, (fan_in, fan_out), jnp.float32, -bound, bound)
        b = jax.random.uniform(kb, (1, fan_out), jnp.float32, -bound, bound)
        return w, b

    w1, b1 = linear(ks[0], ks[1], input_features, hidden1)
    w2, b2 = linear(ks[2], ks[3], hidden1, hidden2)
    w3, b3 = linear(ks[4], ks[5], hidden2, out_features)
    return {"w1": w1, "b1": b1, "w2": w2, "b2": b2, "w3": w3, "b3": b3}


def reference_forward(x, p):
    h1 = jnp.maximum(x @ p["w1"] + p["b1"], 0.0)
    h2 = jnp.maximum(h1 @ p["w2"] + p["b2"], 0.0)
    return h2 @ p["w3"] + p["b3"]


if __name__ == "__main__":
    key = jax.random.PRNGKey(0)
    k_params, k_x1, k_x2 = jax.random.split(key, 3)

    input_features = 82
    params = init_params(k_params, input_features=input_features)

    # Tiny batch: single full block (tb == batch path).
    batch_small = 4
    x_small = jax.random.normal(k_x1, (batch_small, input_features), jnp.float32)
    out_small = jax.block_until_ready(ann_model_forward(x_small, params))
    ref_small = reference_forward(x_small, params)
    assert out_small.shape == (batch_small, 3)
    assert jnp.allclose(out_small, ref_small, atol=1e-5, rtol=1e-5)

    # Non-multiple-of-8 batch: exercises the 2-step grid and the partial
    # edge block (no wrapper-side padding anymore).
    batch_med = 37
    x_med = jax.random.normal(k_x2, (batch_med, input_features), jnp.float32)
    out_med = jax.block_until_ready(ann_model_forward(x_med, params))
    ref_med = reference_forward(x_med, params)
    assert out_med.shape == (batch_med, 3)
    assert jnp.allclose(out_med, ref_med, atol=1e-5, rtol=1e-5)

    print("KERNEL_OK")
</pallas_src>

<mosaic_0001>
module attributes {stable_mosaic.version = 11 : i64} {
  func.func @mlp_kernel(%arg0: i32, %arg1: memref<4x82xf32, #tpu.memory_space<vmem>>, %arg2: memref<82x20xf32, #tpu.memory_space<vmem>>, %arg3: memref<1x20xf32, #tpu.memory_space<vmem>>, %arg4: memref<20x20xf32, #tpu.memory_space<vmem>>, %arg5: memref<1x20xf32, #tpu.memory_space<vmem>>, %arg6: memref<20x3xf32, #tpu.memory_space<vmem>>, %arg7: memref<1x3xf32, #tpu.memory_space<vmem>>, %arg8: memref<4x3xf32, #tpu.memory_space<vmem>>) attributes {dimension_semantics = [#tpu.dimension_semantics<parallel>], iteration_bounds = array<i64: 1>, scalar_prefetch = 0 : i64, scratch_operands = 0 : i64, tpu.core_type = #tpu.core_type<tc>, window_params = [{transform_indices = @transform_0, window_bounds = array<i64: 4, 82>}, {pipeline_mode = #tpu.pipeline_mode<synchronous>, transform_indices = @transform_1, window_bounds = array<i64: 82, 20>}, {pipeline_mode = #tpu.pipeline_mode<synchronous>, transform_indices = @transform_2, window_bounds = array<i64: 1, 20>}, {pipeline_mode = #tpu.pipeline_mode<synchronous>, transform_indices = @transform_3, window_bounds = array<i64: 20, 20>}, {pipeline_mode = #tpu.pipeline_mode<synchronous>, transform_indices = @transform_4, window_bounds = array<i64: 1, 20>}, {pipeline_mode = #tpu.pipeline_mode<synchronous>, transform_indices = @transform_5, window_bounds = array<i64: 20, 3>}, {pipeline_mode = #tpu.pipeline_mode<synchronous>, transform_indices = @transform_6, window_bounds = array<i64: 1, 3>}, {transform_indices = @transform_7, window_bounds = array<i64: 4, 3>}]} {
    %c0 = arith.constant 0 : index
    %c0_0 = arith.constant 0 : index
    %0 = vector.load %arg1[%c0, %c0_0] : memref<4x82xf32, #tpu.memory_space<vmem>>, vector<4x82xf32>
    %c0_1 = arith.constant 0 : index
    %c0_2 = arith.constant 0 : index
    %1 = vector.load %arg2[%c0_1, %c0_2] : memref<82x20xf32, #tpu.memory_space<vmem>>, vector<82x20xf32>
    %cst = arith.constant dense<0.000000e+00> : vector<4x20xf32>
    %2 = tpu.matmul %0, %1, %cst {dimension_numbers = #tpu.dot_dimension_numbers<[1], [0], [0], [1], [0, 0, 1, 1], [], []>} : vector<4x82xf32>, vector<82x20xf32>, vector<4x20xf32> -> vector<4x20xf32>
    %c0_3 = arith.constant 0 : index
    %c0_4 = arith.constant 0 : index
    %3 = vector.load %arg3[%c0_3, %c0_4] : memref<1x20xf32, #tpu.memory_space<vmem>>, vector<1x20xf32>
    %4 = vector.broadcast %3 : vector<1x20xf32> to vector<4x20xf32>
    %5 = arith.addf %2, %4 : vector<4x20xf32>
    %cst_5 = arith.constant 0.000000e+00 : f32
    %6 = vector.broadcast %cst_5 : f32 to vector<4x20xf32>
    %7 = arith.maximumf %5, %6 : vector<4x20xf32>
    %c0_6 = arith.constant 0 : index
    %c0_7 = arith.constant 0 : index
    %8 = vector.load %arg4[%c0_6, %c0_7] : memref<20x20xf32, #tpu.memory_space<vmem>>, vector<20x20xf32>
    %cst_8 = arith.constant dense<0.000000e+00> : vector<4x20xf32>
    %9 = tpu.matmul %7, %8, %cst_8 {dimension_numbers = #tpu.dot_dimension_numbers<[1], [0], [0], [1], [0, 0, 1, 1], [], []>} : vector<4x20xf32>, vector<20x20xf32>, vector<4x20xf32> -> vector<4x20xf32>
    %c0_9 = arith.constant 0 : index
    %c0_10 = arith.constant 0 : index
    %10 = vector.load %arg5[%c0_9, %c0_10] : memref<1x20xf32, #tpu.memory_space<vmem>>, vector<1x20xf32>
    %11 = vector.broadcast %10 : vector<1x20xf32> to vector<4x20xf32>
    %12 = arith.addf %9, %11 : vector<4x20xf32>
    %cst_11 = arith.constant 0.000000e+00 : f32
    %13 = vector.broadcast %cst_11 : f32 to vector<4x20xf32>
    %14 = arith.maximumf %12, %13 : vector<4x20xf32>
    %c0_12 = arith.constant 0 : index
    %c0_13 = arith.constant 0 : index
    %15 = vector.load %arg6[%c0_12, %c0_13] : memref<20x3xf32, #tpu.memory_space<vmem>>, vector<20x3xf32>
    %cst_14 = arith.constant dense<0.000000e+00> : vector<4x3xf32>
    %16 = tpu.matmul %14, %15, %cst_14 {dimension_numbers = #tpu.dot_dimension_numbers<[1], [0], [0], [1], [0, 0, 1, 1], [], []>} : vector<4x20xf32>, vector<20x3xf32>, vector<4x3xf32> -> vector<4x3xf32>
    %c0_15 = arith.constant 0 : index
    %c0_16 = arith.constant 0 : index
    %17 = vector.load %arg7[%c0_15, %c0_16] : memref<1x3xf32, #tpu.memory_space<vmem>>, vector<1x3xf32>
    %18 = vector.broadcast %17 : vector<1x3xf32> to vector<4x3xf32>
    %19 = arith.addf %16, %18 : vector<4x3xf32>
    %c0_17 = arith.constant 0 : index
    %c0_18 = arith.constant 0 : index
    %20 = vector.load %arg8[%c0_17, %c0_18] : memref<4x3xf32, #tpu.memory_space<vmem>>, vector<4x3xf32>
    tpu.vector_store %arg8[%c0_17, %c0_18], %19 {strides = array<i32>} : memref<4x3xf32, #tpu.memory_space<vmem>>, vector<4x3xf32>,
    return
  }
  func.func @transform_0(%arg0: i32) -> (i32, i32) {
    %c0_i32 = arith.constant 0 : i32
    %c0_i32_0 = arith.constant 0 : i32
    return %arg0, %c0_i32 : i32, i32
  }
  func.func @transform_1(%arg0: i32) -> (i32, i32) {
    %c0_i32 = arith.constant 0 : i32
    %c0_i32_0 = arith.constant 0 : i32
    %c0_i32_1 = arith.constant 0 : i32
    return %c0_i32, %c0_i32_0 : i32, i32
  }
  func.func @transform_2(%arg0: i32) -> (i32, i32) {
    %c0_i32 = arith.constant 0 : i32
    %c0_i32_0 = arith.constant 0 : i32
    %c0_i32_1 = arith.constant 0 : i32
    return %c0_i32, %c0_i32_0 : i32, i32
  }
  func.func @transform_3(%arg0: i32) -> (i32, i32) {
    %c0_i32 = arith.constant 0 : i32
    %c0_i32_0 = arith.constant 0 : i32
    %c0_i32_1 = arith.constant 0 : i32
    return %c0_i32, %c0_i32_0 : i32, i32
  }
  func.func @transform_4(%arg0: i32) -> (i32, i32) {
    %c0_i32 = arith.constant 0 : i32
    %c0_i32_0 = arith.constant 0 : i32
    %c0_i32_1 = arith.constant 0 : i32
    return %c0_i32, %c0_i32_0 : i32, i32
  }
  func.func @transform_5(%arg0: i32) -> (i32, i32) {
    %c0_i32 = arith.constant 0 : i32
    %c0_i32_0 = arith.constant 0 : i32
    %c0_i32_1 = arith.constant 0 : i32
    return %c0_i32, %c0_i32_0 : i32, i32
  }
  func.func @transform_6(%arg0: i32) -> (i32, i32) {
    %c0_i32 = arith.constant 0 : i32
    %c0_i32_0 = arith.constant 0 : i32
    %c0_i32_1 = arith.constant 0 : i32
    return %c0_i32, %c0_i32_0 : i32, i32
  }
  func.func @transform_7(%arg0: i32) -> (i32, i32) {
    %c0_i32 = arith.constant 0 : i32
    %c0_i32_0 = arith.constant 0 : i32
    return %arg0, %c0_i32 : i32, i32
  }
}

</mosaic_0001>

<llo_original>
// kernel: tpu_custom_call.1
$region0: #{tpu_custom_call.1}
  #allocation0 [shape = 'u32[]', space=smem, size = 0x4, offset = 0x4, fixed_abs, tag = 'smem constant byte address 0x4 - core index']
  #allocation1 [shape = 'u32[72,128]{1,0:T(1,128)}', space=vmem, size = 0x9000, scoped, tag = 'internal scratch']
  %s0 = inlined_call_operand.vmem [shape: f32[4,82], index: 0, kind: input, shape index: {}]
  %s1 = inlined_call_operand.vmem [shape: f32[82,20], index: 1, kind: input, shape index: {}]
  %s2 = inlined_call_operand.vmem [shape: f32[1,20], index: 2, kind: input, shape index: {}]
  %s3 = inlined_call_operand.vmem [shape: f32[20,20], index: 3, kind: input, shape index: {}]
  %s4 = inlined_call_operand.vmem [shape: f32[1,20], index: 4, kind: input, shape index: {}]
  %s5 = inlined_call_operand.vmem [shape: f32[20,3], index: 5, kind: input, shape index: {}]
  %s6 = inlined_call_operand.vmem [shape: f32[1,3], index: 6, kind: input, shape index: {}]
  %s7 = inlined_call_operand.hbm [shape: f32[4,3], index: 7, kind: output, shape index: {}]
  %s8 = sld [smem:[#allocation0]]
  $region38: #{tpu_custom_call.1} parent=0
    _
  %s10 = ssub.s32 1, %s8
  %s11 = scalar_select 0, %s10, %s8
  $region1: #{tpu_custom_call.1} parent=0
    #allocation2 [shape = 'u8[2048]{0}', space=vmem, size = 0x800, scoped, tag = 'output window, operand 0, single buffered']
    #allocation3 [shape = 's32[1]{0}', space=sflag, size = 0x4, scoped, tag = 'scoped memory for tpu_custom_call.1']
    %12 = vsyncpa [#allocation3], 0
    // Predicated region
    $region2: #{tpu_custom_call.1} parent=1 // pred_check
      _
    $region3: #{tpu_custom_call.1} parent=1 // pred_check_branch
      %14 = sbr.rel (0) target = $region5
    $region4: #{tpu_custom_call.1} parent=1 // pred_region
      _
    $region5: #{tpu_custom_call.1} parent=1 // pred_fallthru
      _
    // Predicated region
    $region6: #{tpu_custom_call.1} parent=1 // pred_check
      _
    $region7: #{tpu_custom_call.1} parent=1 // pred_check_branch
      %16 = sbr.rel (0) target = $region9
    $region8: #{tpu_custom_call.1} parent=1 // pred_region
      _
    $region9: #{tpu_custom_call.1} parent=1 // pred_fallthru
      _
    // Predicated region
    $region10: #{tpu_custom_call.1} parent=1 // pred_check
      _
    $region11: #{tpu_custom_call.1} parent=1 // pred_check_branch
      %18 = sbr.rel (0) target = $region13
    $region12: #{tpu_custom_call.1} parent=1 // pred_region
      _
    $region13: #{tpu_custom_call.1} parent=1 // pred_fallthru
      _
    // Predicated region
    $region14: #{tpu_custom_call.1} parent=1 // pred_check
      _
    $region15: #{tpu_custom_call.1} parent=1 // pred_check_branch
      %20 = sbr.rel (0) target = $region17
    $region16: #{tpu_custom_call.1} parent=1 // pred_region
      _
    $region17: #{tpu_custom_call.1} parent=1 // pred_fallthru
      _
    // Predicated region
    $region18: #{tpu_custom_call.1} parent=1 // pred_check
      _
    $region19: #{tpu_custom_call.1} parent=1 // pred_check_branch
      %22 = sbr.rel (0) target = $region21
    $region20: #{tpu_custom_call.1} parent=1 // pred_region
      _
    $region21: #{tpu_custom_call.1} parent=1 // pred_fallthru
      _
    // Predicated region
    $region22: #{tpu_custom_call.1} parent=1 // pred_check
      _
    $region23: #{tpu_custom_call.1} parent=1 // pred_check_branch
      %24 = sbr.rel (0) target = $region25
    $region24: #{tpu_custom_call.1} parent=1 // pred_region
      _
    $region25: #{tpu_custom_call.1} parent=1 // pred_fallthru
      _
    // Predicated region
    $region26: #{tpu_custom_call.1} parent=1 // pred_check
      _
    $region27: #{tpu_custom_call.1} parent=1 // pred_check_branch
      %26 = sbr.rel (0) target = $region29
    $region28: #{tpu_custom_call.1} parent=1 // pred_region
      _
    $region29: #{tpu_custom_call.1} parent=1 // pred_fallthru
      _
    %v27 = vld [vmem:[%s0] sm:$0xf]
    %v28 = vld [vmem:[%s1] sm:$0xff]
    %v29 = vld [vmem:[%s1 + $0x8] sm:$0xff]
    %v30 = vld [vmem:[%s1 + $0x10] sm:$0xff]
    %v31 = vld [vmem:[%s1 + $0x18] sm:$0xff]
    %v32 = vld [vmem:[%s1 + $0x20] sm:$0xff]
    %v33 = vld [vmem:[%s1 + $0x28] sm:$0xff]
    %v34 = vld [vmem:[%s1 + $0x30] sm:$0xff]
    %v35 = vld [vmem:[%s1 + $0x38] sm:$0xff]
    %v36 = vld [vmem:[%s1 + $0x40] sm:$0xff]
    %v37 = vld [vmem:[%s1 + $0x48] sm:$0xff]
    %v38 = vld [vmem:[%s1 + $0x50] sm:$0x3]
    %v39 = vld [vmem:[%s2] sm:$0x1]
    %v41 = vperm.slane %v39, 0
    %vm43 = vcmask 670720
    %v45 = vsel %vm43, %v27, 0
    %vm47 = vcmask 1041408
    %v49 = vsel %vm47, %v38, 0
    %51 = vmatpush.msra.mxu0 0.0
    %52 = vmatpush.msra.mxu0 0.0
    %53 = vmatpush.msra.mxu0 0.0
    %54 = vmatpush.msra.mxu0 0.0
    %55 = vmatpush.msra.mxu0 0.0
    %56 = vmatpush.msra.mxu0 %v49
    %57 = vmatpush.msra.mxu0 %v37
    %58 = vmatpush.msra.mxu0 %v36
    %59 = vmatpush.msra.mxu0 %v35
    %60 = vmatpush.msra.mxu0 %v34
    %61 = vmatpush.msra.mxu0 %v33
    %62 = vmatpush.msra.mxu0 %v32
    %63 = vmatpush.msra.mxu0 %v31
    %64 = vmatpush.msra.mxu0 %v30
    %65 = vmatpush.msra.mxu0 %v29
    %66 = vmatpush.msra.mxu0 %v28
    %67 = vmatmul.f32.gmra.mxu0 %v45
    %v68 = vpop.f32.mrf.mxu0
    %v69 = vadd.f32 %v41, %v68
    %70 = vdwg.mxu0
    %v71 = vmax.f32 %v69, 0.0
    %v72 = vld [vmem:[%s3] sm:$0xff]
    %v73 = vld [vmem:[%s3 + $0x8] sm:$0xff]
    %v74 = vld [vmem:[%s3 + $0x10] sm:$0xf]
    %v75 = vld [vmem:[%s4] sm:$0x1]
    %v77 = vperm.slane %v75, 0
    %vm79 = vcmask 162816
    %v81 = vsel %vm79, %v71, 0
    %vm83 = vcmask 1043456
    %v85 = vsel %vm83, %v74, 0
    %87 = vmatpush.msra.mxu0 0.0
    %88 = vmatpush.msra.mxu0 0.0
    %89 = vmatpush.msra.mxu0 0.0
    %90 = vmatpush.msra.mxu0 0.0
    %91 = vmatpush.msra.mxu0 0.0
    %92 = vmatpush.msra.mxu0 0.0
    %93 = vmatpush.msra.mxu0 0.0
    %94 = vmatpush.msra.mxu0 0.0
    %95 = vmatpush.msra.mxu0 0.0
    %96 = vmatpush.msra.mxu0 0.0
    %97 = vmatpush.msra.mxu0 0.0
    %98 = vmatpush.msra.mxu0 0.0
    %99 = vmatpush.msra.mxu0 0.0
    %100 = vmatpush.msra.mxu0 %v85
    %101 = vmatpush.msra.mxu0 %v73
    %102 = vmatpush.msra.mxu0 %v72
    %103 = vmatmul.f32.gmra.mxu0 %v81
    %v104 = vpop.f32.mrf.mxu0
    %v105 = vadd.f32 %v77, %v104
    %106 = vdwg.mxu0
    %v107 = vmax.f32 %v105, 0.0
    %v108 = vld [vmem:[%s5] sm:$0xff]
    %v109 = vld [vmem:[%s5 + $0x8] sm:$0xff]
    %v110 = vld [vmem:[%s5 + $0x10] sm:$0xf]
    %v111 = vld [vmem:[%s6] sm:$0x1]
    %v113 = vperm.slane %v111, 0
    %v116 = vsel %vm79, %v107, 0
    %v119 = vsel %vm83, %v110, 0
    %121 = vmatpush.msra.mxu0 0.0
    %122 = vmatpush.msra.mxu0 0.0
    %123 = vmatpush.msra.mxu0 0.0
    %124 = vmatpush.msra.mxu0 0.0
    %125 = vmatpush.msra.mxu0 0.0
    %126 = vmatpush.msra.mxu0 0.0
    %127 = vmatpush.msra.mxu0 0.0
    %128 = vmatpush.msra.mxu0 0.0
    %129 = vmatpush.msra.mxu0 0.0
    %130 = vmatpush.msra.mxu0 0.0
    %131 = vmatpush.msra.mxu0 0.0
    %132 = vmatpush.msra.mxu0 0.0
    %133 = vmatpush.msra.mxu0 0.0
    %134 = vmatpush.msra.mxu0 %v119
    %135 = vmatpush.msra.mxu0 %v109
    %136 = vmatpush.msra.mxu0 %v108
    %137 = vmatmul.f32.gmra.mxu0 %v116
    %v138 = vpop.f32.mrf.mxu0
    %v139 = vadd.f32 %v113, %v138
    %140 = vdwg.mxu0
    %vm141 = vcmask 19456
    %142 = vst.msk [vmem:[#allocation2] sm:$0xf] %vm141, %v139
    // Predicated region
    $region30: #{tpu_custom_call.1} parent=1 // pred_check
      _
    $region31: #{tpu_custom_call.1} parent=1 // pred_check_branch
      %144 = sbr.rel (0) target = $region33
    $region32: #{tpu_custom_call.1} parent=1 // pred_region
      %146 = vsyncadd [#allocation3], 0
      %s148 = sshll.u32 [#allocation2], 4
      %s149 = int_to_ptr.vmem [resolvable:$true] %s148
      %s150 = sshll.u32 %s7, 4
      %s151 = int_to_ptr.hbm [resolvable:$true] %s150
      %153 = dma.vmem_to_hbm [thread:$0]  %s149, 64, %s151, [#allocation3]
    $region33: #{tpu_custom_call.1} parent=1 // pred_fallthru
      _
    // Predicated region
    $region34: #{tpu_custom_call.1} parent=1 // pred_check
      _
    $region35: #{tpu_custom_call.1} parent=1 // pred_check_branch
      %155 = sbr.rel (0) target = $region37
    $region36: #{tpu_custom_call.1} parent=1 // pred_region
      %157 = dma.done [#allocation3], 64
    $region37: #{tpu_custom_call.1} parent=1 // pred_fallthru
      _
    %158 = vsyncpa [#allocation3], 1

</llo_original>
